<compile_context>
chip_gen: v5e
topology: v5e:2x2
jax: 0.10.0
libtpu: 0.0.40
codegen_flags: <defaults>
</compile_context>

<pallas_src>
import jax
import jax.numpy as jnp
from jax.experimental import pallas as pl
from jax.experimental.pallas import tpu as pltpu


def _patch_proj_kernel(p_ref, w_ref, b_ref, o_ref):
    """(TM, K) @ (K, N) + (1, N) -> (TM, N); f32 accumulation on the MXU."""
    acc = jnp.dot(p_ref[...], w_ref[...], preferred_element_type=jnp.float32)
    o_ref[...] = (acc + b_ref[...]).astype(o_ref.dtype)


def _round_up(v, m):
    return (v + m - 1) // m * m


def _hw_defaults():
    """(block_m, vmem_limit_bytes) per TPU generation.

    v5e/v6e have 128 MiB VMEM -> larger tiles amortize per-step overhead a bit
    further; v7x has 64 MiB per TensorCore -> keep the conservative setting.
    """
    try:
        vmem = pltpu.get_tpu_info().vmem_capacity_bytes
    except Exception:
        vmem = 64 * 1024 * 1024
    if vmem >= 100 * 1024 * 1024:
        return 2048, 96 * 1024 * 1024      # v5e / v6e (128 MiB VMEM)
    return 1024, 48 * 1024 * 1024          # v7x (64 MiB per TC) / safe fallback


def _choose_m_tiling(M, block_m):
    """Tile M so the grid has >= 2 (and even) steps when possible.

    dimension_semantics=("parallel",) only helps v7x's two TensorCores if
    there are at least two grid steps; an even count avoids a lopsided tail.
    """
    if M <= block_m:
        tm = max(16, _round_up(pl.cdiv(M, 2), 16))
    else:
        g = pl.cdiv(M, block_m)
        g += g % 2
        tm = max(16, _round_up(pl.cdiv(M, g), 16))
    return tm, pl.cdiv(M, tm)


def patch_embed(x, conv_weight, conv_bias, patch_size, *,
                compute_dtype=jnp.bfloat16, out_dtype=None,
                block_m=None, vmem_limit_bytes=None,
                trim_output_padding=True):
    """ViT patch embedding: proj(x).flatten(2).transpose(1, 2).

    x: (B, C, H, W)   conv_weight: (E, C, ph, pw)   conv_bias: (E,)
    Returns (B, num_patches, E_out) where E_out = E (trim_output_padding=True)
    or the 128-padded E. Output dtype defaults to compute_dtype (bf16) — the
    kernel is HBM-bound, so halving the output stream is the main win; pass
    out_dtype=x.dtype to exactly match the PyTorch module's dtype behavior.
    """
    B, C, H, W = x.shape
    E = conv_weight.shape[0]
    ph, pw = patch_size
    assert H % ph == 0 and W % pw == 0, "image size must divide by patch size"
    gh, gw = H // ph, W // pw
    num_patches = gh * gw

    K = C * ph * pw
    M = B * num_patches

    if out_dtype is None:
        out_dtype = compute_dtype
    if block_m is None or vmem_limit_bytes is None:
        bm_d, vmem_d = _hw_defaults()
        block_m = block_m if block_m is not None else bm_d
        vmem_limit_bytes = (vmem_limit_bytes if vmem_limit_bytes is not None
                            else vmem_d)

    # im2col glue: non-overlapping (ph x pw) blocks flattened in (C, ph, pw)
    # order, matching the flattened Conv2d(kernel=stride=patch) weight. Done
    # at bf16 so any materialized intermediate is half-size; allow_input_fusion
    # asks XLA to fuse this producer into the pallas_call input.
    # TODO(synk): fold this space-to-depth into the kernel's own DMA so the
    # (M, K) matrix is guaranteed never to round-trip HBM.
    patches = x.astype(compute_dtype).reshape(B, C, gh, ph, gw, pw)
    patches = jnp.transpose(patches, (0, 2, 4, 1, 3, 5)).reshape(M, K)

    # Lane-dense output: pad embed dim to the next multiple of 128 (a no-op
    # for the module default E=768 and for the demo's E=128).
    N = _round_up(E, 128)
    w_mat = conv_weight.reshape(E, K).T.astype(compute_dtype)      # (K, N=E)
    b_vec = conv_bias.astype(jnp.float32)
    if N != E:
        w_mat = jnp.pad(w_mat, ((0, 0), (0, N - E)))
        b_vec = jnp.pad(b_vec, (0, N - E))
    b_mat = b_vec.reshape(1, N)

    tm, grid_m = _choose_m_tiling(M, block_m)

    out = pl.pallas_call(
        _patch_proj_kernel,
        out_shape=jax.ShapeDtypeStruct((M, N), out_dtype),
        grid_spec=pl.GridSpec(
            grid=(grid_m,),
            in_specs=[
                pl.BlockSpec((tm, K), lambda i: (i, 0)),   # streamed per step
                pl.BlockSpec((K, N), lambda i: (0, 0)),    # resident weight
                pl.BlockSpec((1, N), lambda i: (0, 0)),    # resident bias
                # TODO(synk): pipeline_mode=pl.Buffered(1) on the two resident
                # specs would free one spare VMEM buffer on v7x.
            ],
            out_specs=pl.BlockSpec((tm, N), lambda i: (i, 0)),
        ),
        compiler_params=pltpu.CompilerParams(
            dimension_semantics=("parallel",),             # shards across TCs
            vmem_limit_bytes=vmem_limit_bytes,
            allow_input_fusion=[True, False, False],       # fuse im2col producer
        ),
    )(patches, w_mat, b_mat)

    if N != E and trim_output_padding:
        # NOTE: this is an extra HBM read+write of the output; for embed dims
        # that are not 128-aligned prefer trim_output_padding=False and let
        # the consumer read the padded matrix.
        out = out[:, :E]
        N = E
    # (B*num_patches, N) -> (B, num_patches, N): contiguous, free reshape.
    return out.reshape(B, num_patches, N)


def reference_patch_embed(x, conv_weight, conv_bias, patch_size):
    """Pure-JAX reference: conv2d with kernel=stride=patch, NCHW."""
    y = jax.lax.conv_general_dilated(
        x, conv_weight,
        window_strides=patch_size,
        padding="VALID",
        dimension_numbers=("NCHW", "OIHW", "NCHW"),
    )
    y = y + conv_bias[None, :, None, None]
    B, E, gh, gw = y.shape
    return jnp.transpose(y.reshape(B, E, gh * gw), (0, 2, 1))


if __name__ == "__main__":
    # Small shapes consistent with the module (img 16, patch 4, in_c 4).
    # embed_dim=128 is chosen 128-aligned (like the module default 768) so the
    # output is lane-dense with no padding/slice pass.
    # NOTE: do not tune from this toy shape (K=64 underfills the 256-deep MXU
    # on v6e/v7x); benchmark with real ViT shapes (M=B*196, K=768, N=768).
    B, C, H, W = 2, 4, 16, 16
    patch = (4, 4)
    E = 128

    key = jax.random.PRNGKey(0)
    kx, kw, kb = jax.random.split(key, 3)
    x = jax.random.normal(kx, (B, C, H, W), dtype=jnp.float32)
    conv_weight = 0.02 * jax.random.normal(
        kw, (E, C, patch[0], patch[1]), dtype=jnp.float32)
    conv_bias = 0.01 * jax.random.normal(kb, (E,), dtype=jnp.float32)

    out = patch_embed(x, conv_weight, conv_bias, patch)
    out = jax.block_until_ready(out)

    num_patches = (H // patch[0]) * (W // patch[1])
    assert out.shape == (B, num_patches, E), out.shape
    assert out.dtype == jnp.bfloat16, out.dtype
    out_f32 = out.astype(jnp.float32)

    # Reference on the same bf16-quantized inputs (both paths accumulate in
    # f32), isolating kernel correctness from bf16 input/output rounding.
    x_q = x.astype(jnp.bfloat16).astype(jnp.float32)
    w_q = conv_weight.astype(jnp.bfloat16).astype(jnp.float32)
    ref_q = reference_patch_embed(x_q, w_q, conv_bias, patch)
    assert jnp.allclose(out_f32, ref_q, atol=1e-2, rtol=1e-2), \
        float(jnp.max(jnp.abs(out_f32 - ref_q)))

    # Full-precision sanity check (loose tolerance for bf16 rounding).
    ref_f32 = reference_patch_embed(x, conv_weight, conv_bias, patch)
    assert jnp.allclose(out_f32, ref_f32, atol=3e-2, rtol=3e-2), \
        float(jnp.max(jnp.abs(out_f32 - ref_f32)))

    print("KERNEL_OK")
</pallas_src>

<mosaic_0001>
module attributes {stable_mosaic.version = 11 : i64} {
  func.func @_patch_proj_kernel(%arg0: i32, %arg1: memref<16x64xbf16, #tpu.memory_space<vmem>>, %arg2: memref<64x128xbf16, #tpu.memory_space<vmem>>, %arg3: memref<1x128xf32, #tpu.memory_space<vmem>>, %arg4: memref<16x128xbf16, #tpu.memory_space<vmem>>) attributes {dimension_semantics = [#tpu.dimension_semantics<parallel>], iteration_bounds = array<i64: 2>, scalar_prefetch = 0 : i64, scratch_operands = 0 : i64, tpu.core_type = #tpu.core_type<tc>, window_params = [{transform_indices = @transform_0, window_bounds = array<i64: 16, 64>}, {pipeline_mode = #tpu.pipeline_mode<synchronous>, transform_indices = @transform_1, window_bounds = array<i64: 64, 128>}, {pipeline_mode = #tpu.pipeline_mode<synchronous>, transform_indices = @transform_2, window_bounds = array<i64: 1, 128>}, {transform_indices = @transform_3, window_bounds = array<i64: 16, 128>}]} {
    %c0 = arith.constant 0 : index
    %c0_0 = arith.constant 0 : index
    %0 = vector.load %arg1[%c0, %c0_0] : memref<16x64xbf16, #tpu.memory_space<vmem>>, vector<16x64xbf16>
    %c0_1 = arith.constant 0 : index
    %c0_2 = arith.constant 0 : index
    %1 = vector.load %arg2[%c0_1, %c0_2] : memref<64x128xbf16, #tpu.memory_space<vmem>>, vector<64x128xbf16>
    %cst = arith.constant dense<0.000000e+00> : vector<16x128xf32>
    %2 = tpu.matmul %0, %1, %cst {dimension_numbers = #tpu.dot_dimension_numbers<[1], [0], [0], [1], [0, 0, 1, 1], [], []>} : vector<16x64xbf16>, vector<64x128xbf16>, vector<16x128xf32> -> vector<16x128xf32>
    %c0_3 = arith.constant 0 : index
    %c0_4 = arith.constant 0 : index
    %3 = vector.load %arg3[%c0_3, %c0_4] : memref<1x128xf32, #tpu.memory_space<vmem>>, vector<1x128xf32>
    %4 = vector.broadcast %3 : vector<1x128xf32> to vector<16x128xf32>
    %5 = arith.addf %2, %4 : vector<16x128xf32>
    %6 = arith.truncf %5 : vector<16x128xf32> to vector<16x128xbf16>
    %c0_5 = arith.constant 0 : index
    %c0_6 = arith.constant 0 : index
    %7 = vector.load %arg4[%c0_5, %c0_6] : memref<16x128xbf16, #tpu.memory_space<vmem>>, vector<16x128xbf16>
    tpu.vector_store %arg4[%c0_5, %c0_6], %6 {strides = array<i32>} : memref<16x128xbf16, #tpu.memory_space<vmem>>, vector<16x128xbf16>,
    return
  }
  func.func @transform_0(%arg0: i32) -> (i32, i32) {
    %c0_i32 = arith.constant 0 : i32
    %c0_i32_0 = arith.constant 0 : i32
    return %arg0, %c0_i32 : i32, i32
  }
  func.func @transform_1(%arg0: i32) -> (i32, i32) {
    %c0_i32 = arith.constant 0 : i32
    %c0_i32_0 = arith.constant 0 : i32
    %c0_i32_1 = arith.constant 0 : i32
    return %c0_i32, %c0_i32_0 : i32, i32
  }
  func.func @transform_2(%arg0: i32) -> (i32, i32) {
    %c0_i32 = arith.constant 0 : i32
    %c0_i32_0 = arith.constant 0 : i32
    %c0_i32_1 = arith.constant 0 : i32
    return %c0_i32, %c0_i32_0 : i32, i32
  }
  func.func @transform_3(%arg0: i32) -> (i32, i32) {
    %c0_i32 = arith.constant 0 : i32
    %c0_i32_0 = arith.constant 0 : i32
    return %arg0, %c0_i32 : i32, i32
  }
}

</mosaic_0001>

<llo_original>
// kernel: tpu_custom_call.1
$region0: #{tpu_custom_call.1}
  #allocation0 [shape = 'u32[]', space=smem, size = 0x4, offset = 0x4, fixed_abs, tag = 'smem constant byte address 0x4 - core index']
  #allocation1 [shape = 'u32[72,128]{1,0:T(1,128)}', space=vmem, size = 0x9000, scoped, tag = 'internal scratch']
  %s0 = inlined_call_operand.hbm [shape: bf16[32,64], index: 0, kind: input, shape index: {}]
  %s1 = inlined_call_operand.hbm [shape: bf16[64,128], index: 1, kind: input, shape index: {}]
  %s2 = inlined_call_operand.vmem [shape: f32[1,128], index: 2, kind: input, shape index: {}]
  %s3 = inlined_call_operand.hbm [shape: bf16[32,128], index: 3, kind: output, shape index: {}]
  %s4 = sld [smem:[#allocation0]]
  $region53: #{tpu_custom_call.1} parent=0
    _
  %s6 = ssub.s32 1, %s4
  %s7 = scalar_select 0, %s6, %s4
  $region1: #{tpu_custom_call.1} parent=0
    #allocation2 [shape = 'u8[8192]{0}', space=vmem, size = 0x2000, scoped, tag = 'input window, operand 0']
    #allocation3 [shape = 's32[2]{0}', space=sflag, size = 0x8, scoped, tag = 'scoped memory for tpu_custom_call.1']
    #allocation4 [shape = 's32[2]{0}', space=sflag, size = 0x8, scoped, tag = 'scoped memory for tpu_custom_call.1']
    #allocation5 [shape = 'u8[16384]{0}', space=vmem, size = 0x4000, scoped, tag = 'input window, operand 1, single buffered']
    #allocation6 [shape = 's32[1]{0}', space=sflag, size = 0x4, scoped, tag = 'scoped memory for tpu_custom_call.1']
    #allocation7 [shape = 'u8[8192]{0}', space=vmem, size = 0x2000, scoped, tag = 'output window, operand 0']
    %8 = vsyncpa [#allocation3], 0
    %s9 = scalar_lea.sflag [#allocation3], 1
    %10 = vsyncpa %s9, 0
    %11 = vsyncpa [#allocation6], 0
    %12 = vsyncpa [#allocation4], 0
    %s13 = scalar_lea.sflag [#allocation4], 1
    %14 = vsyncpa %s13, 0
    loop: start=0, step=1, limit=4
    $region2: #{tpu_custom_call.1} parent=1 // loop_pre_header
      _
    $region3: #{tpu_custom_call.1} parent=1 // loop_header
      %s16 = sphi 0, %s20
      %p17 = scmp.ge.s32.totalorder %s16, 4
      %s26 = sphi 0, %s28
      %s29 = sphi 0, %s26
      %s30 = sphi 0, %s29
      %s46 = sphi 0, %s30
      %s50 = sphi 0, %s50
      %s52 = sphi 0, %s50
      %s53 = sphi 0, %s52
      %s67 = sphi 0, %s53
      %s71 = sphi 0, %s71
      %s73 = sphi 0, %s71
      %s74 = sphi 0, %s73
      %s88 = sphi 0, %s74
      %s94 = sphi 0, %s96
      %s97 = sphi 0, %s94
      %s98 = sphi 0, %s97
      %s114 = sphi 0, %s98
    $region4: #{tpu_custom_call.1} parent=1 // loop_header_branch
      %19 = sbr.rel (%p17) target = $region8
    $region5: #{tpu_custom_call.1} parent=1 // loop_body
      %s21 = ssub.s32 %s16, 1
      %s22 = ssub.s32 %s16, 2
      %s23 = sadd.s32 %s16, 1
      %s24 = ssub.s32 %s16, %s23
      %p25 = scmp.eq.s32.totalorder %s24, 0
      %s27 = sadd.s32 %s26, 1
      %s28 = scalar_select %p25, %s26, %s27
      %p31 = pneg %p25
      %p32 = scmp.eq.s32.totalorder %s16, 1
      %p33 = por %p31, %p32
      %p34 = scmp.ne.s32.totalorder %s26, %s29
      %p35 = scmp.eq.s32.totalorder %s16, 0
      %p36 = por %p34, %p35
      %p37 = scmp.ne.s32.totalorder %s26, %s29
      %p38 = scmp.eq.s32.totalorder %s21, 1
      %p39 = por %p37, %p38
      %p40 = scmp.ne.s32.totalorder %s29, %s30
      %p41 = scmp.eq.s32.totalorder %s21, 0
      %p42 = por %p40, %p41
      %p43 = scmp.ne.s32.totalorder %s29, %s30
      %p44 = scmp.eq.s32.totalorder %s22, 1
      %p45 = por %p43, %p44
      %p47 = scmp.ne.s32.totalorder %s30, %s46
      %p48 = scmp.eq.s32.totalorder %s22, 0
      %p49 = por %p47, %p48
      %s51 = sadd.s32 %s50, 1
      %p54 = scmp.eq.s32.totalorder %s16, 1
      %p55 = scmp.ne.s32.totalorder %s50, %s52
      %p56 = scmp.eq.s32.totalorder %s16, 0
      %p57 = por %p55, %p56
      %p58 = scmp.ne.s32.totalorder %s50, %s52
      %p59 = scmp.eq.s32.totalorder %s21, 1
      %p60 = por %p58, %p59
      %p61 = scmp.ne.s32.totalorder %s52, %s53
      %p62 = scmp.eq.s32.totalorder %s21, 0
      %p63 = por %p61, %p62
      %p64 = scmp.ne.s32.totalorder %s52, %s53
      %p65 = scmp.eq.s32.totalorder %s22, 1
      %p66 = por %p64, %p65
      %p68 = scmp.ne.s32.totalorder %s53, %s67
      %p69 = scmp.eq.s32.totalorder %s22, 0
      %p70 = por %p68, %p69
      %s72 = sadd.s32 %s71, 1
      %p75 = scmp.eq.s32.totalorder %s16, 1
      %p76 = scmp.ne.s32.totalorder %s71, %s73
      %p77 = scmp.eq.s32.totalorder %s16, 0
      %p78 = por %p76, %p77
      %p79 = scmp.ne.s32.totalorder %s71, %s73
      %p80 = scmp.eq.s32.totalorder %s21, 1
      %p81 = por %p79, %p80
      %p82 = scmp.ne.s32.totalorder %s73, %s74
      %p83 = scmp.eq.s32.totalorder %s21, 0
      %p84 = por %p82, %p83
      %p85 = scmp.ne.s32.totalorder %s73, %s74
      %p86 = scmp.eq.s32.totalorder %s22, 1
      %p87 = por %p85, %p86
      %p89 = scmp.ne.s32.totalorder %s74, %s88
      %p90 = scmp.eq.s32.totalorder %s22, 0
      %p91 = por %p89, %p90
      %s92 = ssub.s32 %s16, %s23
      %p93 = scmp.eq.s32.totalorder %s92, 0
      %s95 = sadd.s32 %s94, 1
      %s96 = scalar_select %p93, %s94, %s95
      %p99 = pneg %p93
      %p100 = scmp.eq.s32.totalorder %s16, 1
      %p101 = por %p99, %p100
      %p102 = scmp.ne.s32.totalorder %s94, %s97
      %p103 = scmp.eq.s32.totalorder %s16, 0
      %p104 = por %p102, %p103
      %p105 = scmp.ne.s32.totalorder %s94, %s97
      %p106 = scmp.eq.s32.totalorder %s21, 1
      %p107 = por %p105, %p106
      %p108 = scmp.ne.s32.totalorder %s97, %s98
      %p109 = scmp.eq.s32.totalorder %s21, 0
      %p110 = por %p108, %p109
      %p111 = scmp.ne.s32.totalorder %s97, %s98
      %p112 = scmp.eq.s32.totalorder %s22, 1
      %p113 = por %p111, %p112
      %p115 = scmp.ne.s32.totalorder %s98, %s114
      %p116 = scmp.eq.s32.totalorder %s22, 0
      %p117 = por %p115, %p116
      %p118 = scmp.le.s32.totalorder 1, %s16
      %p119 = scmp.lt.s32.totalorder %s16, 3
      %p120 = pnand %p118, %p119
      %p121 = pneg %p120
      // Predicated region
      $region9: #{tpu_custom_call.1} parent=5 // pred_check
        _
      $region10: #{tpu_custom_call.1} parent=5 // pred_check_branch
        %123 = sbr.rel (%p120) target = $region12
      $region11: #{tpu_custom_call.1} parent=5 // pred_region
        %s124 = ssub.s32 %s16, 1
        // Predicated region
        $region13: #{tpu_custom_call.1} parent=11 // pred_check
          %p125 = pneg %p63
        $region14: #{tpu_custom_call.1} parent=11 // pred_check_branch
          %127 = sbr.rel (%p125) target = $region16
        $region15: #{tpu_custom_call.1} parent=11 // pred_region
          %129 = vsyncadd [#allocation6], 0
          %s130 = sshll.u32 %s1, 4
          %s131 = int_to_ptr.hbm [resolvable:$true] %s130
          %s132 = sshll.u32 [#allocation5], 4
          %s133 = int_to_ptr.vmem [resolvable:$true] %s132
          %138 = dma.hbm_to_vmem [thread:$0]  %s131, 512, %s133, [#allocation6], 64, 64, 4
        $region16: #{tpu_custom_call.1} parent=11 // pred_fallthru
          _
        // Predicated region
        $region17: #{tpu_custom_call.1} parent=11 // pred_check
          %p139 = pneg %p84
        $region18: #{tpu_custom_call.1} parent=11 // pred_check_branch
          %141 = sbr.rel (%p139) target = $region20
        $region19: #{tpu_custom_call.1} parent=11 // pred_region
          _
        $region20: #{tpu_custom_call.1} parent=11 // pred_fallthru
          _
      $region12: #{tpu_custom_call.1} parent=5 // pred_fallthru
        _
      %p142 = scmp.lt.s32.totalorder %s16, 2
      // Predicated region
      $region21: #{tpu_custom_call.1} parent=5 // pred_check
        %p143 = pneg %p142
      $region22: #{tpu_custom_call.1} parent=5 // pred_check_branch
        %145 = sbr.rel (%p143) target = $region24
      $region23: #{tpu_custom_call.1} parent=5 // pred_region
        // Predicated region
        $region25: #{tpu_custom_call.1} parent=23 // pred_check
          %p146 = pneg %p36
        $region26: #{tpu_custom_call.1} parent=23 // pred_check_branch
          %148 = sbr.rel (%p146) target = $region28
        $region27: #{tpu_custom_call.1} parent=23 // pred_region
          %s149 = sand.u32 %s26, 1
          %s150 = scalar_lea.sflag [#allocation3], %s149
          %s151 = sand.u32 %s26, 1
          %s152 = smul.addr %s151, 8
          %s153 = scalar_lea.vmem [#allocation2], %s152
          %s154 = smul.u32 2, %s16
          %156 = vsyncadd %s150, 0
          %s157 = smul.addr %s154, 4
          %s158 = scalar_lea.hbm %s0, %s157
          %s159 = sshll.u32 %s158, 4
          %s160 = int_to_ptr.hbm [resolvable:$true] %s159
          %s161 = sshll.u32 %s153, 4
          %s162 = int_to_ptr.vmem [resolvable:$true] %s161
          %167 = dma.hbm_to_vmem [thread:$0]  %s160, 128, %s162, %s150, 64, 64, 4
        $region28: #{tpu_custom_call.1} parent=23 // pred_fallthru
          _
      $region24: #{tpu_custom_call.1} parent=5 // pred_fallthru
        _
      %p168 = scmp.le.s32.totalorder 1, %s16
      %p169 = scmp.lt.s32.totalorder %s16, 3
      %p170 = pnand %p168, %p169
      %p171 = pneg %p170
      // Predicated region
      $region29: #{tpu_custom_call.1} parent=5 // pred_check
        _
      $region30: #{tpu_custom_call.1} parent=5 // pred_check_branch
        %173 = sbr.rel (%p170) target = $region32
      $region31: #{tpu_custom_call.1} parent=5 // pred_region
        %s174 = ssub.s32 %s16, 1
        %s175 = sand.u32 %s29, 1
        %s176 = scalar_lea.sflag [#allocation3], %s175
        %s177 = sand.u32 %s29, 1
        %s178 = smul.addr %s177, 8
        %s179 = scalar_lea.vmem [#allocation2], %s178
        // Predicated region
        $region33: #{tpu_custom_call.1} parent=31 // pred_check
          %p180 = pneg %p42
        $region34: #{tpu_custom_call.1} parent=31 // pred_check_branch
          %182 = sbr.rel (%p180) target = $region36
        $region35: #{tpu_custom_call.1} parent=31 // pred_region
          %184 = dma.done %s176, 128
        $region36: #{tpu_custom_call.1} parent=31 // pred_fallthru
          _
        // Predicated region
        $region37: #{tpu_custom_call.1} parent=31 // pred_check
          %p185 = pneg %p63
        $region38: #{tpu_custom_call.1} parent=31 // pred_check_branch
          %187 = sbr.rel (%p185) target = $region40
        $region39: #{tpu_custom_call.1} parent=31 // pred_region
          %189 = dma.done [#allocation6], 512
        $region40: #{tpu_custom_call.1} parent=31 // pred_fallthru
          _
        %s190 = sand.u32 %s29, 1
        %s191 = scalar_lea.sflag [#allocation3], %s190
        %s192 = sand.u32 %s29, 1
        %s193 = smul.addr %s192, 8
        %s194 = scalar_lea.vmem [#allocation2], %s193
        %p195 = pneg %p42
        %p196 = pneg %p39
        %p197 = pneg %p63
        %p198 = pneg %p60
        %p199 = pneg %p84
        %p200 = pneg %p81
        %p201 = pneg %p110
        %p202 = pneg %p107
        %s203 = sand.u32 %s97, 1
        %s204 = scalar_lea.sflag [#allocation4], %s203
        %s205 = sand.u32 %s97, 1
        %s206 = smul.addr %s205, 8
        %s207 = scalar_lea.vmem [#allocation7], %s206
        %s208 = smul.u32 2, %s21
        %s209 = smul.u32 2, %s21
        %v211 = vld [vmem:[%s179] sm:$0xf]
        %v212 = vld [vmem:[%s179 + $0x4] sm:$0xf]
        %v213 = vld [vmem:[#allocation5] sm:$0xf]
        %v214 = vld [vmem:[#allocation5 + $0x4] sm:$0xf]
        %v215 = vld [vmem:[#allocation5 + $0x8] sm:$0xf]
        %v216 = vld [vmem:[#allocation5 + $0xc] sm:$0xf]
        %v217 = vld [vmem:[#allocation5 + $0x10] sm:$0xf]
        %v218 = vld [vmem:[#allocation5 + $0x14] sm:$0xf]
        %v219 = vld [vmem:[#allocation5 + $0x18] sm:$0xf]
        %v220 = vld [vmem:[#allocation5 + $0x1c] sm:$0xf]
        %v221 = vld [vmem:[%s2] sm:$0x1]
        %v223 = vperm.slane %v221, 0
        %v227 = vunpack.c.l.b16 %v211
        %v228 = vunpack.c.l.b16 %v212
        %v229 = vpack.c.b16 %v228, %v227
        %v238 = vunpack.c.l.b16 %v213
        %v239 = vunpack.c.l.b16 %v214
        %v240 = vunpack.c.l.b16 %v215
        %v241 = vunpack.c.l.b16 %v216
        %v242 = vunpack.c.l.b16 %v217
        %v243 = vunpack.c.l.b16 %v218
        %v244 = vunpack.c.l.b16 %v219
        %v245 = vunpack.c.l.b16 %v220
        %v246 = vpack.c.b16 %v239, %v238
        %v247 = vpack.c.b16 %v241, %v240
        %v248 = vpack.c.b16 %v243, %v242
        %v249 = vpack.c.b16 %v245, %v244
        %vm254 = vcmask 523264
        %v256 = vsel %vm254, %v229, 0
        %258 = vmatpush.bf16.msra.mxu0 0
        %259 = vmatpush.bf16.msra.mxu0 0
        %260 = vmatpush.bf16.msra.mxu0 0
        %261 = vmatpush.bf16.msra.mxu0 0
        %262 = vmatpush.bf16.msra.mxu0 %v249
        %263 = vmatpush.bf16.msra.mxu0 %v248
        %264 = vmatpush.bf16.msra.mxu0 %v247
        %265 = vmatpush.bf16.msra.mxu0 %v246
        %266 = vmatmul.bf16.gmra.mxu0 %v256
        %v267 = vpop.f32.mrf.mxu0
        %v268 = vadd.f32 %v223, %v267
        %v269 = vpop.f32.mrf.mxu0
        %v270 = vadd.f32 %v223, %v269
        %271 = vdwg.mxu0
        %v272 = vpack.c.bf16 %v268, %v268
        %v273 = vpack.c.bf16 %v270, %v270
        %274 = vst [vmem:[%s207] sm:$0xf] %v272
        %275 = vst [vmem:[%s207 + $0x4] sm:$0xf] %v273
        %s276 = sand.u32 %s97, 1
        %s277 = scalar_lea.sflag [#allocation4], %s276
        %s278 = sand.u32 %s97, 1
        %s279 = smul.addr %s278, 8
        %s280 = scalar_lea.vmem [#allocation7], %s279
        // Predicated region
        $region41: #{tpu_custom_call.1} parent=31 // pred_check
          %p281 = pneg %p107
        $region42: #{tpu_custom_call.1} parent=31 // pred_check_branch
          %283 = sbr.rel (%p281) target = $region44
        $region43: #{tpu_custom_call.1} parent=31 // pred_region
          %s284 = smul.u32 2, %s21
          %286 = vsyncadd %s277, 0
          %s287 = smul.addr %s284, 4
          %s288 = scalar_lea.hbm %s3, %s287
          %s289 = sshll.u32 %s280, 4
          %s290 = int_to_ptr.vmem [resolvable:$true] %s289
          %s291 = sshll.u32 %s288, 4
          %s292 = int_to_ptr.hbm [resolvable:$true] %s291
          %297 = dma.vmem_to_hbm [thread:$0]  %s290, 128, %s292, %s277, 64, 64, 4
        $region44: #{tpu_custom_call.1} parent=31 // pred_fallthru
          _
      $region32: #{tpu_custom_call.1} parent=5 // pred_fallthru
        _
      %p298 = scmp.le.s32.totalorder 2, %s16
      // Predicated region
      $region45: #{tpu_custom_call.1} parent=5 // pred_check
        %p299 = pneg %p298
      $region46: #{tpu_custom_call.1} parent=5 // pred_check_branch
        %301 = sbr.rel (%p299) target = $region48
      $region47: #{tpu_custom_call.1} parent=5 // pred_region
        %s302 = ssub.s32 %s16, 2
        // Predicated region
        $region49: #{tpu_custom_call.1} parent=47 // pred_check
          %p303 = pneg %p113
        $region50: #{tpu_custom_call.1} parent=47 // pred_check_branch
          %305 = sbr.rel (%p303) target = $region52
        $region51: #{tpu_custom_call.1} parent=47 // pred_region
          %s306 = sand.u32 %s98, 1
          %s307 = scalar_lea.sflag [#allocation4], %s306
          %s308 = sand.u32 %s98, 1
          %s309 = smul.addr %s308, 8
          %s310 = scalar_lea.vmem [#allocation7], %s309
          %312 = dma.done %s307, 128
        $region52: #{tpu_custom_call.1} parent=47 // pred_fallthru
          _
      $region48: #{tpu_custom_call.1} parent=5 // pred_fallthru
        _
    $region6: #{tpu_custom_call.1} parent=1 // loop_footer
      %s20 = sadd.s32 1, %s16
    $region7: #{tpu_custom_call.1} parent=1 // loop_footer_branch
      %15 = sbr.rel target = $region3
    $region8: #{tpu_custom_call.1} parent=1 // loop_exit
      _
    %313 = vsyncpa [#allocation3], 1
    %s314 = scalar_lea.sflag [#allocation3], 1
    %315 = vsyncpa %s314, 1
    %316 = vsyncpa [#allocation6], 1
    %317 = vsyncpa [#allocation4], 1
    %s318 = scalar_lea.sflag [#allocation4], 1
    %319 = vsyncpa %s318, 1

</llo_original>
